<compile_context>
chip_gen: v7x
topology: tpu7x:2x2x1
jax: 0.10.0
libtpu: 0.0.40
codegen_flags: <defaults>
</compile_context>

<pallas_src>
import functools

import jax
import jax.numpy as jnp
from jax import lax
from jax.experimental import pallas as pl
from jax.experimental.pallas import tpu as pltpu

_SUBLANE = 8
_LANE = 128
_MAX_TR = 64           # keeps the (tr, 128) register fold at <= 8 vregs/variant
_MODE = {"l1": "abs_sum", "l2": "sq_sum", "inf": "abs_max"}


def _ceil_to(x, m):
    return ((x + m - 1) // m) * m


@functools.lru_cache(maxsize=None)
def _vmem_budget():
    """(per-input block bytes, vmem_limit_bytes), TPU-generation aware.

    v7x: 64 MiB VMEM/TC -> 4 MiB blocks (2 inputs x 2 pipeline buffers =
    16 MiB) under a 32 MiB scoped limit.  v5e/v6e: 128 MiB -> 8 MiB blocks,
    64 MiB limit.  Falls back to the v7x-safe numbers if the query fails.
    """
    try:
        cap = int(pltpu.get_tpu_info().vmem_capacity_bytes)
    except Exception:
        cap = 0
    if cap >= 100 * 1024 * 1024:          # v5e / v6e class parts
        return 8 * 1024 * 1024, 64 * 1024 * 1024
    return 4 * 1024 * 1024, 32 * 1024 * 1024


def _pick_tiles(rows, cols, itemsize, block_bytes):
    """Pick (tr, tc): tr multiple of 8 (<= _MAX_TR), tc multiple of 128, with
    tr*tc*itemsize ~ block_bytes.  Grows tc before tr (long DMA bursts)."""
    target_elems = max(block_bytes // itemsize, _SUBLANE * _LANE)
    tr = min(_ceil_to(rows, _SUBLANE), _MAX_TR)
    if rows > tr:
        pass                                   # already >= 2 row blocks
    elif rows >= 2 * _SUBLANE:
        # Guarantee >= 2 blocks on the 'parallel' row axis so both v7x
        # TensorCores (and their DMA slots) are used.
        tr = _ceil_to(pl.cdiv(rows, 2), _SUBLANE)
    # TODO(synk): when rows <= 8 and H*W is huge, add a parallel column-chunk
    # grid axis (per-chunk partials combined in JAX) so v7x's second
    # TensorCore is not idle.
    tc_cap = max((target_elems // tr) // _LANE * _LANE, _LANE)
    tc = min(_ceil_to(cols, _LANE), tc_cap)
    return tr, tc


# ----------------------------- Pallas kernel --------------------------------

def _wave_reduce_kernel(scale_ref, x_ref, y_ref, *out_refs, mode, variants,
                        use_scale, cols, mask_cols):
    """Streaming per-row reduction of f(d) over the column (reduction) axis.

    mode     : 'abs_sum' (L1), 'sq_sum' (L2), 'abs_max' (row L-inf).
    variants : elementwise pre-transforms of d0 = x - y (optionally scaled):
               'plain' -> d0, 'absy' -> |y|*d0, 'zeromask' -> (y==0)*d0.
    Each variant owns one (tr, 128) f32 output block that doubles as the
    accumulator (out index_map is constant over the reduction axis).
    """
    j = pl.program_id(1)
    last = pl.num_programs(1) - 1
    tr, tc = x_ref.shape
    nchunks = tc // _LANE
    is_max = (mode == "abs_max")
    neutral = -jnp.inf if is_max else 0.0

    @pl.when(j == 0)
    def _init():
        for o in out_refs:
            o[...] = jnp.full(o.shape, neutral, o.dtype)

    inv_sx = scale_ref[0] if use_scale else None
    inv_sy = scale_ref[1] if use_scale else None

    def chunk_vals(xs, ys):
        base = xs * inv_sx - ys * inv_sy if use_scale else xs - ys
        vals = []
        for var in variants:
            if var == "plain":
                d = base
            elif var == "absy":
                d = jnp.abs(ys) * base
            elif var == "zeromask":
                d = jnp.where(ys == 0.0, base, 0.0)
            else:
                raise ValueError(f"unknown variant {var!r}")
            vals.append(d * d if mode == "sq_sum" else jnp.abs(d))
        return vals

    def fold(mask_tail):
        # Fold the whole (tr, tc) block into one (tr, 128) running value per
        # variant, in registers (VPU only); the accumulator VMEM RMW happens
        # once per grid step, not per vreg.
        def body(k, carry):
            off = pl.multiple_of(k * _LANE, _LANE)
            xs = x_ref[:, pl.ds(off, _LANE)].astype(jnp.float32)
            ys = y_ref[:, pl.ds(off, _LANE)].astype(jnp.float32)
            vals = chunk_vals(xs, ys)
            if mask_tail:
                cid = (j * tc + off
                       + lax.broadcasted_iota(jnp.int32, (tr, _LANE), 1))
                valid = cid < cols
                vals = [jnp.where(valid, v, neutral) for v in vals]
            if is_max:
                return tuple(jnp.maximum(c, v) for c, v in zip(carry, vals))
            return tuple(c + v for c, v in zip(carry, vals))

        init = tuple(jnp.full((tr, _LANE), neutral, jnp.float32)
                     for _ in variants)
        folded = lax.fori_loop(0, nchunks, body, init,
                               unroll=min(8, nchunks))
        for o, f in zip(out_refs, folded):
            if is_max:
                o[...] = jnp.maximum(o[...], f)
            else:
                o[...] = o[...] + f

    if mask_cols:
        # Ragged-column masking only on the last column step (cold path).
        @pl.when(j != last)
        def _hot():
            fold(False)

        @pl.when(j == last)
        def _tail():
            fold(True)
    else:
        fold(False)


def _finalize(partials, rows, cols, order):
    # Keep this slice adjacent to the pallas_call: rows beyond `rows` in the
    # last row block are uninitialized-input garbage (possibly Inf/NaN).
    p = partials[:rows]
    if order == "inf":
        return jnp.mean(jnp.max(p, axis=1))
    return jnp.sum(p) / (rows * cols)


def _wave_terms_pallas(x2, y2, order, variants, inv_scales, block_bytes,
                       vmem_limit):
    rows, cols = x2.shape
    mode = _MODE[order]
    itemsize = max(x2.dtype.itemsize, y2.dtype.itemsize)
    tr, tc = _pick_tiles(rows, cols, itemsize, block_bytes)
    n_r = pl.cdiv(rows, tr)
    n_c = pl.cdiv(cols, tc)
    mask_cols = (cols % tc) != 0
    use_scale = inv_scales is not None
    n_var = len(variants)

    if use_scale:
        scales = jnp.stack([inv_scales[0], inv_scales[1]]).astype(jnp.float32)
    else:
        scales = jnp.ones((2,), jnp.float32)

    kernel = functools.partial(
        _wave_reduce_kernel, mode=mode, variants=variants,
        use_scale=use_scale, cols=cols, mask_cols=mask_cols)

    out_shape = [jax.ShapeDtypeStruct((n_r * tr, _LANE), jnp.float32)
                 for _ in range(n_var)]
    out_specs = [pl.BlockSpec((tr, _LANE), lambda i, j: (i, 0))
                 for _ in range(n_var)]

    bytes_in = rows * cols * (x2.dtype.itemsize + y2.dtype.itemsize)
    bytes_out = n_var * n_r * tr * _LANE * 4
    cost = pl.CostEstimate(flops=5 * rows * cols * n_var, transcendentals=0,
                           bytes_accessed=int(bytes_in + bytes_out))

    outs = pl.pallas_call(
        kernel,
        out_shape=out_shape,
        grid=(n_r, n_c),
        in_specs=[
            pl.BlockSpec(memory_space=pltpu.MemorySpace.SMEM),   # (2,) scales
            pl.BlockSpec((tr, tc), lambda i, j: (i, j)),
            pl.BlockSpec((tr, tc), lambda i, j: (i, j)),
        ],
        out_specs=out_specs,
        compiler_params=pltpu.CompilerParams(
            dimension_semantics=("parallel", "arbitrary"),
            vmem_limit_bytes=vmem_limit),
        cost_estimate=cost,
    )(scales, x2, y2)

    return [_finalize(o, rows, cols, order) for o in outs]


def _wave_terms_jax(x2, y2, order, variants, inv_scales):
    """Plain-JAX path for tiny inputs (launch-overhead dominated)."""
    xf = x2.astype(jnp.float32)
    yf = y2.astype(jnp.float32)
    if inv_scales is not None:
        base = xf * inv_scales[0] - yf * inv_scales[1]
    else:
        base = xf - yf
    terms = []
    for var in variants:
        if var == "plain":
            d = base
        elif var == "absy":
            d = jnp.abs(yf) * base
        else:
            d = jnp.where(yf == 0.0, base, 0.0)
        v = d * d if order == "l2" else jnp.abs(d)
        if order == "inf":
            terms.append(jnp.mean(jnp.max(v, axis=1)))
        else:
            terms.append(jnp.mean(v))
    return terms


# --------------------------------- WaveLoss ----------------------------------

def wave_loss(x, y, order="l1", scale=1.0, factor=None, masked=None, *,
              min_pallas_elems=1 << 20, block_bytes=None):
    """JAX/Pallas equivalent of WaveLoss.forward (no learnable parameters)."""
    if order not in _MODE:
        raise ValueError(f"unknown order {order!r}")

    rows = x.shape[0] * x.shape[1]
    cols = x.size // rows
    x2 = x.reshape(rows, cols)        # free reshape on contiguous NCHW
    y2 = y.reshape(rows, cols)

    default_block_bytes, vmem_limit = _vmem_budget()
    if block_bytes is None:
        block_bytes = default_block_bytes

    def terms(variants, inv_scales):
        if x2.size < min_pallas_elems:
            return _wave_terms_jax(x2, y2, order, variants, inv_scales)
        return _wave_terms_pallas(x2, y2, order, variants, inv_scales,
                                  block_bytes, vmem_limit)

    if factor is not None:
        # torch.Tensor.std() defaults to the unbiased estimator (ddof=1).
        # The scaling itself is fused into the kernel (SMEM scalars).
        # TODO(synk): the mean/var passes for std still read x and y once in
        # XLA; they could be fused into a preceding Pallas pass if needed.
        inv_scales = (1.0 / jnp.std(x, ddof=1), 1.0 / jnp.std(y, ddof=1))
    else:
        inv_scales = None

    if masked is not None:
        if factor is None:
            # Fused: one pass over x, y with two accumulators.
            t1, t2 = terms(("absy", "zeromask"), None)
        else:
            # Faithful to the torch module: both terms are loss(x/x.std(),
            # y/y.std()) on this path, so `masked` blends identical losses.
            (t,) = terms(("plain",), inv_scales)
            t1, t2 = t, t
        loss = (1.0 - masked) * t1 + masked * t2
    else:
        (loss,) = terms(("plain",), inv_scales)

    return loss * scale


# ----------------------------------- main ------------------------------------

if __name__ == "__main__":
    key = jax.random.PRNGKey(0)
    k1, k2, k3, k4, k5 = jax.random.split(key, 5)

    def ref_loss(x, y, order="l1", scale=1.0, factor=None, masked=None):
        # Pure-JAX mirror of the torch module (f32 math).
        def base(a, b):
            d = jnp.abs(a - b)
            if order == "l1":
                return jnp.mean(d)
            if order == "l2":
                return jnp.mean(d * d)
            r = d.reshape(d.shape[0] * d.shape[1], -1)
            return jnp.mean(jnp.max(r, axis=1))

        if factor is not None:
            xs, ys = x / jnp.std(x, ddof=1), y / jnp.std(y, ddof=1)
        if masked is not None:
            if factor is None:
                l1_ = base(jnp.abs(y) * x, jnp.abs(y) * y)
                m = (y == 0).astype(x.dtype)
                l2_ = base(m * x, m * y)
            else:
                l1_ = base(xs, ys)
                l2_ = base(xs, ys)
            loss = (1.0 - masked) * l1_ + masked * l2_
        else:
            loss = base(xs, ys) if factor is not None else base(x, y)
        return loss * scale

    checks = []

    # 1) Default config at the demo shape (small-input JAX fallback path).
    x = jax.random.normal(k1, (2, 4, 16, 16), dtype=jnp.float32)
    y = jax.random.normal(k2, (2, 4, 16, 16), dtype=jnp.float32)
    got = jax.block_until_ready(wave_loss(x, y, order="l1", scale=1.0))
    checks.append(("default/l1", got, ref_loss(x, y)))

    # 2) Pallas path (forced) at the demo shape, all orders.
    for order in ("l1", "l2", "inf"):
        got = jax.block_until_ready(
            wave_loss(x, y, order=order, min_pallas_elems=0))
        checks.append((f"pallas/{order}", got, ref_loss(x, y, order=order)))

    # 3) Ragged rows (15) and columns (391): masked tail path.
    xr = jax.random.normal(k3, (3, 5, 17, 23), dtype=jnp.float32)
    yr = jax.random.normal(k4, (3, 5, 17, 23), dtype=jnp.float32)
    for order in ("l1", "l2", "inf"):
        got = jax.block_until_ready(
            wave_loss(xr, yr, order=order, min_pallas_elems=0))
        checks.append((f"ragged/{order}", got, ref_loss(xr, yr, order=order)))

    # 4) Multiple column steps + 2 row blocks + hot/tail mask split
    #    (small block_bytes to exercise the multi-step reduction).
    xm = jax.random.normal(k1, (2, 12, 40, 100), dtype=jnp.float32)
    ym = jax.random.normal(k2, (2, 12, 40, 100), dtype=jnp.float32)
    for order in ("l1", "inf"):
        got = jax.block_until_ready(
            wave_loss(xm, ym, order=order, min_pallas_elems=0,
                      block_bytes=64 * 1024))
        checks.append((f"multi/{order}", got, ref_loss(xm, ym, order=order)))

    # 5) factor path (in-kernel fused 1/std scaling).
    got = jax.block_until_ready(
        wave_loss(x, y, order="l1", factor=1, min_pallas_elems=0))
    checks.append(("factor/l1", got, ref_loss(x, y, factor=1)))

    # 6) masked path (fused two-accumulator kernel); y has exact zeros.
    yz = jnp.where(jax.random.uniform(k5, y.shape) < 0.3, 0.0, y)
    got = jax.block_until_ready(
        wave_loss(x, yz, order="l1", masked=0.25, min_pallas_elems=0))
    checks.append(("masked/l1", got, ref_loss(x, yz, masked=0.25)))

    for name, got, want in checks:
        assert jnp.allclose(got, want, rtol=2e-5, atol=1e-6), (name, got, want)

    print("KERNEL_OK")
</pallas_src>

<mosaic_0001>
module attributes {stable_mosaic.version = 11 : i64} {
  func.func @_wave_reduce_kernel(%arg0: i32, %arg1: i32, %arg2: memref<2xf32, #tpu.memory_space<smem>>, %arg3: memref<8x256xf32, #tpu.memory_space<vmem>>, %arg4: memref<8x256xf32, #tpu.memory_space<vmem>>, %arg5: memref<8x128xf32, #tpu.memory_space<vmem>>) attributes {dimension_semantics = [#tpu.dimension_semantics<parallel>, #tpu.dimension_semantics<arbitrary>], iteration_bounds = array<i64: 1, 1>, scalar_prefetch = 0 : i64, scratch_operands = 0 : i64, tpu.core_type = #tpu.core_type<tc>, window_params = [{transform_indices = @transform_0, window_bounds = array<i64: 2>}, {transform_indices = @transform_1, window_bounds = array<i64: 8, 256>}, {transform_indices = @transform_2, window_bounds = array<i64: 8, 256>}, {transform_indices = @transform_3, window_bounds = array<i64: 8, 128>}]} {
    %c0_i32 = arith.constant 0 : i32
    %0 = arith.cmpi eq, %arg1, %c0_i32 : i32
    %1 = arith.extui %0 : i1 to i32
    %c0_i32_0 = arith.constant 0 : i32
    %2 = arith.cmpi ne, %1, %c0_i32_0 : i32
    scf.if %2 {
      %cst_10 = arith.constant 0.000000e+00 : f32
      %25 = vector.broadcast %cst_10 : f32 to vector<8x128xf32>
      %c0_11 = arith.constant 0 : index
      %c0_12 = arith.constant 0 : index
      %26 = vector.load %arg5[%c0_11, %c0_12] : memref<8x128xf32, #tpu.memory_space<vmem>>, vector<8x128xf32>
      tpu.vector_store %arg5[%c0_11, %c0_12], %25 {strides = array<i32>} : memref<8x128xf32, #tpu.memory_space<vmem>>, vector<8x128xf32>,
    } else {
    }
    %cst = arith.constant 0.000000e+00 : f32
    %3 = vector.broadcast %cst : f32 to vector<8x128xf32>
    %c0_i32_1 = arith.constant 0 : i32
    %c128_i32 = arith.constant 128 : i32
    %4 = arith.muli %c0_i32_1, %c128_i32 : i32
    %5 = tpu.assume_multiple %4, 128 : i32
    %c0 = arith.constant 0 : index
    %6 = arith.index_cast %5 : i32 to index
    %7 = vector.load %arg3[%c0, %6] : memref<8x256xf32, #tpu.memory_space<vmem>>, vector<8x128xf32>
    %c0_2 = arith.constant 0 : index
    %8 = arith.index_cast %5 : i32 to index
    %9 = vector.load %arg4[%c0_2, %8] : memref<8x256xf32, #tpu.memory_space<vmem>>, vector<8x128xf32>
    %10 = arith.subf %7, %9 : vector<8x128xf32>
    %11 = math.absf %10 : vector<8x128xf32>
    %12 = arith.addf %3, %11 : vector<8x128xf32>
    %c1_i32 = arith.constant 1 : i32
    %c128_i32_3 = arith.constant 128 : i32
    %13 = arith.muli %c1_i32, %c128_i32_3 : i32
    %14 = tpu.assume_multiple %13, 128 : i32
    %c0_4 = arith.constant 0 : index
    %15 = arith.index_cast %14 : i32 to index
    %16 = vector.load %arg3[%c0_4, %15] : memref<8x256xf32, #tpu.memory_space<vmem>>, vector<8x128xf32>
    %c0_5 = arith.constant 0 : index
    %17 = arith.index_cast %14 : i32 to index
    %18 = vector.load %arg4[%c0_5, %17] : memref<8x256xf32, #tpu.memory_space<vmem>>, vector<8x128xf32>
    %19 = arith.subf %16, %18 : vector<8x128xf32>
    %20 = math.absf %19 : vector<8x128xf32>
    %21 = arith.addf %12, %20 : vector<8x128xf32>
    %c2_i32 = arith.constant 2 : i32
    %c0_6 = arith.constant 0 : index
    %c0_7 = arith.constant 0 : index
    %22 = vector.load %arg5[%c0_6, %c0_7] : memref<8x128xf32, #tpu.memory_space<vmem>>, vector<8x128xf32>
    %23 = arith.addf %22, %21 : vector<8x128xf32>
    %c0_8 = arith.constant 0 : index
    %c0_9 = arith.constant 0 : index
    %24 = vector.load %arg5[%c0_8, %c0_9] : memref<8x128xf32, #tpu.memory_space<vmem>>, vector<8x128xf32>
    tpu.vector_store %arg5[%c0_8, %c0_9], %23 {strides = array<i32>} : memref<8x128xf32, #tpu.memory_space<vmem>>, vector<8x128xf32>,
    return
  }
  func.func @transform_0(%arg0: i32, %arg1: i32) -> i32 {
    %c0_i32 = arith.constant 0 : i32
    %c0_i32_0 = arith.constant 0 : i32
    return %c0_i32 : i32
  }
  func.func @transform_1(%arg0: i32, %arg1: i32) -> (i32, i32) {
    %c0_i32 = arith.constant 0 : i32
    return %arg0, %arg1 : i32, i32
  }
  func.func @transform_2(%arg0: i32, %arg1: i32) -> (i32, i32) {
    %c0_i32 = arith.constant 0 : i32
    return %arg0, %arg1 : i32, i32
  }
  func.func @transform_3(%arg0: i32, %arg1: i32) -> (i32, i32) {
    %c0_i32 = arith.constant 0 : i32
    %c0_i32_0 = arith.constant 0 : i32
    return %arg0, %c0_i32 : i32, i32
  }
}

</mosaic_0001>

<llo_original>
// kernel: tpu_custom_call.1
$region0: #{tpu_custom_call.1}
  #allocation0 [shape = 'u32[]', space=smem, size = 0x4, offset = 0x4, fixed_abs, tag = 'smem constant byte address 0x4 - core index']
  #allocation1 [shape = 'u32[144,128]{1,0:T(1,128)}', space=vmem, size = 0x12000, scoped, tag = 'internal scratch']
  %s0 = inlined_call_operand.hbm [shape: f32[2], index: 0, kind: input, shape index: {}]
  %s1 = inlined_call_operand.hbm [shape: f32[8,256], index: 1, kind: input, shape index: {}]
  %s2 = inlined_call_operand.hbm [shape: f32[8,256], index: 2, kind: input, shape index: {}]
  %s3 = inlined_call_operand.hbm [shape: f32[8,128], index: 3, kind: output, shape index: {}]
  %s4 = sld [smem:[#allocation0]]
  $region38: #{tpu_custom_call.1} parent=0
    _
  %s6 = ssub.s32 1, %s4
  %s7 = scalar_select 0, %s6, %s4
  $region1: #{tpu_custom_call.1} parent=0
    #allocation2 [shape = 'u8[512]{0}', space=smem, size = 0x200, scoped, tag = 'input window, operand 0, single buffered']
    #allocation3 [shape = 's32[1]{0}', space=sflag, size = 0x4, scoped, tag = 'scoped memory for tpu_custom_call.1']
    #allocation4 [shape = 's32[1]{0}', space=sflag, size = 0x4, scoped, tag = 'scoped memory for tpu_custom_call.1']
    #allocation5 [shape = 's32[1]{0}', space=sflag, size = 0x4, scoped, tag = 'scoped memory for tpu_custom_call.1']
    #allocation6 [shape = 'u8[8192]{0}', space=vmem, size = 0x2000, scoped, tag = 'input window, operand 1, single buffered']
    #allocation7 [shape = 'u8[8192]{0}', space=vmem, size = 0x2000, scoped, tag = 'input window, operand 2, single buffered']
    #allocation8 [shape = 's32[1]{0}', space=sflag, size = 0x4, scoped, tag = 'scoped memory for tpu_custom_call.1']
    #allocation9 [shape = 'u8[4096]{0}', space=vmem, size = 0x1000, scoped, tag = 'output window, operand 0, single buffered']
    %8 = vsyncpa [#allocation5], 0
    %9 = vsyncpa [#allocation3], 0
    %10 = vsyncpa [#allocation8], 0
    %11 = vsyncpa [#allocation4], 0
    // Predicated region
    $region2: #{tpu_custom_call.1} parent=1 // pred_check
      _
    $region3: #{tpu_custom_call.1} parent=1 // pred_check_branch
      %13 = sbr.rel (0) target = $region5
    $region4: #{tpu_custom_call.1} parent=1 // pred_region
      %s15 = ssub.s32 16, 16
      %16 = vsyncadd [#allocation5], %s15
      %19 = dma.hbm_to_smem %s0, 16, [#allocation2], [#allocation5]
    $region5: #{tpu_custom_call.1} parent=1 // pred_fallthru
      _
    // Predicated region
    $region6: #{tpu_custom_call.1} parent=1 // pred_check
      _
    $region7: #{tpu_custom_call.1} parent=1 // pred_check_branch
      %21 = sbr.rel (0) target = $region9
    $region8: #{tpu_custom_call.1} parent=1 // pred_region
      %s23 = ssub.s32 256, 256
      %24 = vsyncadd [#allocation3], %s23
      %s26 = sshll.u32 [#allocation6], 4
      %s27 = int_to_ptr.vmem [resolvable:$true] %s26
      %29 = dma.hbm_to_vmem [thread:$0]  %s1, 256, %s27, [#allocation3]
    $region9: #{tpu_custom_call.1} parent=1 // pred_fallthru
      _
    // Predicated region
    $region10: #{tpu_custom_call.1} parent=1 // pred_check
      _
    $region11: #{tpu_custom_call.1} parent=1 // pred_check_branch
      %31 = sbr.rel (0) target = $region13
    $region12: #{tpu_custom_call.1} parent=1 // pred_region
      %s33 = ssub.s32 256, 256
      %34 = vsyncadd [#allocation8], %s33
      %s36 = sshll.u32 [#allocation7], 4
      %s37 = int_to_ptr.vmem [resolvable:$true] %s36
      %39 = dma.hbm_to_vmem [thread:$0]  %s2, 256, %s37, [#allocation8]
    $region13: #{tpu_custom_call.1} parent=1 // pred_fallthru
      _
    // Predicated region
    $region14: #{tpu_custom_call.1} parent=1 // pred_check
      _
    $region15: #{tpu_custom_call.1} parent=1 // pred_check_branch
      %41 = sbr.rel (0) target = $region17
    $region16: #{tpu_custom_call.1} parent=1 // pred_region
      %42 = dma.done [#allocation5], 16
    $region17: #{tpu_custom_call.1} parent=1 // pred_fallthru
      _
    // Predicated region
    $region18: #{tpu_custom_call.1} parent=1 // pred_check
      _
    $region19: #{tpu_custom_call.1} parent=1 // pred_check_branch
      %44 = sbr.rel (0) target = $region21
    $region20: #{tpu_custom_call.1} parent=1 // pred_region
      %45 = dma.done [#allocation3], 256
    $region21: #{tpu_custom_call.1} parent=1 // pred_fallthru
      _
    // Predicated region
    $region22: #{tpu_custom_call.1} parent=1 // pred_check
      _
    $region23: #{tpu_custom_call.1} parent=1 // pred_check_branch
      %47 = sbr.rel (0) target = $region25
    $region24: #{tpu_custom_call.1} parent=1 // pred_region
      %48 = dma.done [#allocation8], 256
    $region25: #{tpu_custom_call.1} parent=1 // pred_fallthru
      _
    %49 = sfence
    %p50 = scmp.eq.s32.totalorder 0, 0
    // Predicated region
    $region26: #{tpu_custom_call.1} parent=1 // pred_check
      %p51 = pneg %p50
    $region27: #{tpu_custom_call.1} parent=1 // pred_check_branch
      %53 = sbr.rel (%p51) target = $region29
    $region28: #{tpu_custom_call.1} parent=1 // pred_region
      %54 = vst [vmem:[#allocation9] sm:$0xff] 0.0
    $region29: #{tpu_custom_call.1} parent=1 // pred_fallthru
      _
    %v55 = vld [vmem:[#allocation6] sm:$0xff]
    %v56 = vld [vmem:[#allocation7] sm:$0xff]
    %v57 = vsub.f32 %v55, %v56
    %v58 = vand.u32 2147483647, %v57
    %v59 = vadd.f32 %v58, 0.0
    %s60 = scalar_lea.vmem [#allocation6], 8
    %v61 = vld [vmem:[%s60] sm:$0xff]
    %s62 = scalar_lea.vmem [#allocation7], 8
    %v63 = vld [vmem:[%s62] sm:$0xff]
    %v64 = vsub.f32 %v61, %v63
    %v65 = vand.u32 2147483647, %v64
    %v66 = vadd.f32 %v59, %v65
    %v67 = vld [vmem:[#allocation9] sm:$0xff]
    %v68 = vadd.f32 %v67, %v66
    %69 = vst [vmem:[#allocation9] sm:$0xff] %v68
    // Predicated region
    $region30: #{tpu_custom_call.1} parent=1 // pred_check
      _
    $region31: #{tpu_custom_call.1} parent=1 // pred_check_branch
      %71 = sbr.rel (0) target = $region33
    $region32: #{tpu_custom_call.1} parent=1 // pred_region
      %s73 = ssub.s32 128, 128
      %74 = vsyncadd [#allocation4], %s73
      %s76 = sshll.u32 [#allocation9], 4
      %s77 = int_to_ptr.vmem [resolvable:$true] %s76
      %79 = dma.vmem_to_hbm [thread:$0]  %s77, 128, %s3, [#allocation4]
    $region33: #{tpu_custom_call.1} parent=1 // pred_fallthru
      _
    // Predicated region
    $region34: #{tpu_custom_call.1} parent=1 // pred_check
      _
    $region35: #{tpu_custom_call.1} parent=1 // pred_check_branch
      %81 = sbr.rel (0) target = $region37
    $region36: #{tpu_custom_call.1} parent=1 // pred_region
      %82 = dma.done [#allocation4], 128
    $region37: #{tpu_custom_call.1} parent=1 // pred_fallthru
      _
    %83 = vsyncpa [#allocation3], 1
    %84 = vsyncpa [#allocation8], 1
    %85 = vsyncpa [#allocation4], 1
    %86 = vsyncpa [#allocation5], 1

</llo_original>
